<compile_context>
chip_gen: v6e
topology: v6e:2x2x1
jax: 0.10.0
libtpu: 0.0.40
codegen_flags: <defaults>
</compile_context>

<pallas_src>
import jax
import jax.numpy as jnp
from jax.experimental import pallas as pl
from jax.experimental.pallas import tpu as pltpu

T2 = 0.5              # temperature (module's `T2` global)
INV_T2 = 1.0 / T2
EPS = 1e-8            # module's `eps` global
NORM_EPS = 1e-12      # F.normalize default eps


def _pick_tile(batch):
    """Square row/col tile size.  Small batches: single full tile (bypasses the
    (8,128) divisibility rule); large batches: a 128-multiple divisor capped at
    512 so per-step overhead amortizes while staying well inside VMEM."""
    if batch <= 512:
        return batch
    for t in (512, 256, 128):
        if batch % t == 0:
            return t
    return batch  # fallback: single tile (correct, just VMEM-heavier)


def _contrastive_kernel(q_ref, k_ref, lab_q_ref, lab_k_ref, out_ref,
                        q_scaled_ref, same_acc_ref, all_acc_ref):
    """One (feature, row_tile, col_tile) grid step.

    q_ref      : (T, D)  row-tile features (resident across the col axis)
    k_ref      : (T, D)  col-tile features (pipelined / double-buffered)
    lab_q_ref  : (T, 1)  row-tile labels   (1.0 = rumor, 0.0 = non-rumor)
    lab_k_ref  : (1, T)  col-tile labels
    out_ref    : (T, 1)  per-row -log terms (written at the last col step)
    q_scaled_ref : (T, D) f32 scratch, normalized row tile * (1/T2)
    same_acc_ref, all_acc_ref : (T, 1) f32 scratch accumulators
    """
    r = pl.program_id(1)
    c = pl.program_id(2)
    nc = pl.num_programs(2)

    # --- init: normalize the row tile once per (feature, row_tile), reset acc.
    @pl.when(c == 0)
    def _():
        xq = q_ref[...].astype(jnp.float32)
        ssq = jnp.sum(xq * xq, axis=1, keepdims=True)
        # F.normalize: x / max(||x||, eps)  ==  x * rsqrt(max(||x||^2, eps^2))
        xqn = xq * jax.lax.rsqrt(jnp.maximum(ssq, NORM_EPS * NORM_EPS))
        q_scaled_ref[...] = xqn * INV_T2          # fold 1/T2 into the LHS
        same_acc_ref[...] = jnp.zeros_like(same_acc_ref)
        all_acc_ref[...] = jnp.zeros_like(all_acc_ref)

    # --- normalize the column tile (f32 on the VPU/EUP).
    xk = k_ref[...].astype(jnp.float32)
    ssk = jnp.sum(xk * xk, axis=1, keepdims=True)
    xkn = xk * jax.lax.rsqrt(jnp.maximum(ssk, NORM_EPS * NORM_EPS))

    # --- bf16 MXU operands, f32 accumulate.  sim is already scaled by 1/T2.
    lhs = q_scaled_ref[...].astype(jnp.bfloat16)   # (T, D)
    rhs = xkn.astype(jnp.bfloat16)                 # (T, D)
    sim = jax.lax.dot_general(lhs, rhs, (((1,), (1,)), ((), ())),
                              preferred_element_type=jnp.float32)   # (T, T)
    e = jnp.exp(sim)

    # --- class sums without materializing any (B,B) mask:
    #   same_i = lab_i * sum_j(lab_j e_ij) + (1-lab_i) * sum_j((1-lab_j) e_ij)
    # TODO(synk): for very wide column tiles, move these row reductions onto
    # the MXU (E @ [lab_k, 1-lab_k]) to relieve the XLU slot.
    lab_q = lab_q_ref[...]                         # (T, 1)
    lab_k = lab_k_ref[...]                         # (1, T)
    t_lab = jnp.sum(e * lab_k, axis=1, keepdims=True)   # (T, 1)
    t_all = jnp.sum(e, axis=1, keepdims=True)            # (T, 1)
    same_contrib = lab_q * t_lab + (1.0 - lab_q) * (t_all - t_lab)

    same_acc_ref[...] += same_contrib
    all_acc_ref[...] += t_all

    # --- diagonal-tile correction: remove the self-similarity term exactly
    #     (uses the same bf16 products the MXU saw, so it cancels even for
    #     zero-norm rows).
    @pl.when(c == r)
    def _():
        d = jnp.sum(lhs.astype(jnp.float32) * rhs.astype(jnp.float32),
                    axis=1, keepdims=True)         # ≈ diag(sim)
        e_diag = jnp.exp(d)
        same_acc_ref[...] -= e_diag                # nominator excludes self
        all_acc_ref[...] -= e_diag                 # denominator excludes self

    # --- finalize: per-row loss term  -log(nom / den + eps).
    @pl.when(c == nc - 1)
    def _():
        nom = same_acc_ref[...]
        den = all_acc_ref[...]
        out_ref[...] = -jnp.log(nom / den + EPS)


def full_contrastive_loss(text, image, label):
    """text, image: (B, D) float32/bfloat16 ; label: (B,) int (1 = rumor)."""
    B, D = text.shape
    feats = jnp.stack([text, image], axis=0)       # (2, B, D), original dtype
    labf = label.astype(jnp.float32)               # assumed exactly 0/1
    lab_col = labf.reshape(B, 1)
    lab_row = labf.reshape(1, B)

    T = _pick_tile(B)
    R = B // T
    grid = (2, R, R)

    li = pl.pallas_call(
        _contrastive_kernel,
        out_shape=jax.ShapeDtypeStruct((2, B, 1), jnp.float32),
        grid_spec=pltpu.PrefetchScalarGridSpec(
            num_scalar_prefetch=0,
            grid=grid,
            in_specs=[
                # row tile of features (resident across the col axis)
                pl.BlockSpec((None, T, D), lambda f, r, c: (f, r, 0)),
                # col tile of features (pipelined across the col axis)
                pl.BlockSpec((None, T, D), lambda f, r, c: (f, c, 0)),
                # row-tile labels as a column vector
                pl.BlockSpec((T, 1), lambda f, r, c: (r, 0)),
                # col-tile labels as a row vector
                pl.BlockSpec((1, T), lambda f, r, c: (0, c)),
            ],
            out_specs=pl.BlockSpec((None, T, 1), lambda f, r, c: (f, r, 0)),
            scratch_shapes=[
                pltpu.VMEM((T, D), jnp.float32),   # normalized row tile * 1/T2
                pltpu.VMEM((T, 1), jnp.float32),   # same-class accumulator
                pltpu.VMEM((T, 1), jnp.float32),   # all-columns accumulator
            ],
        ),
        compiler_params=pltpu.CompilerParams(
            dimension_semantics=("parallel", "parallel", "arbitrary"),
            vmem_limit_bytes=40 * 1024 * 1024,     # fits v7x (64 MiB) headroom
        ),
    )(feats, feats, lab_col, lab_row)

    # Tiny class-weighted epilogue (kept in JAX so the row/feature grid axes
    # stay "parallel"); guards the degenerate all-one-class batch.
    li = li[..., 0]                                # (2, B)
    num_r = jnp.sum(labf)
    num_nr = jnp.float32(B) - num_r
    loss_r = jnp.sum(li * lab_row) / jnp.maximum(num_r, 1.0)
    loss_nr = jnp.sum(li * (1.0 - lab_row)) / jnp.maximum(num_nr, 1.0)
    return loss_r + loss_nr


def _reference_loss(text, image, label):
    """Pure-JAX (f32) reference mirroring the PyTorch forward (eager only)."""
    def normalize(x):
        n = jnp.sqrt(jnp.sum(x * x, axis=1, keepdims=True))
        return x / jnp.maximum(n, NORM_EPS)

    def compute_loss(feat, label):
        ft_r = feat[label == 1]
        ft_nr = feat[label == 0]
        num_r, num_nr = ft_r.shape[0], ft_nr.shape[0]
        sim_rr = ft_r @ ft_r.T
        sim_nn = ft_nr @ ft_nr.T
        sim_rn = ft_r @ ft_nr.T
        sim_nr = ft_nr @ ft_r.T
        mr = 1.0 - jnp.eye(num_r)
        mn = 1.0 - jnp.eye(num_nr)
        nom_r = jnp.sum(mr * jnp.exp(sim_rr / T2), axis=1)
        nom_n = jnp.sum(mn * jnp.exp(sim_nn / T2), axis=1)
        den_r = nom_r + jnp.sum(jnp.exp(sim_rn / T2), axis=1)
        den_n = nom_n + jnp.sum(jnp.exp(sim_nr / T2), axis=1)
        loss_r = jnp.sum(-jnp.log(nom_r / den_r + EPS)) / num_r
        loss_n = jnp.sum(-jnp.log(nom_n / den_n + EPS)) / num_nr
        return loss_r + loss_n

    tn, im = normalize(text), normalize(image)
    return compute_loss(tn, label) + compute_loss(im, label)


if __name__ == "__main__":
    B, D = 8, 32          # batch=8 (4 rumor + 4 non-rumor), hidden=32
    key = jax.random.PRNGKey(0)
    k1, k2 = jax.random.split(key)
    text = jax.random.normal(k1, (B, D), dtype=jnp.float32)
    image = jax.random.normal(k2, (B, D), dtype=jnp.float32)
    label = jnp.array([1, 0, 1, 0, 1, 0, 1, 0], dtype=jnp.int32)

    loss = jax.block_until_ready(full_contrastive_loss(text, image, label))
    ref = _reference_loss(text, image, label)

    # bf16 MXU operands introduce ~1e-3-level deviation in sim; tolerance is
    # loosened accordingly (still <1% of the loss magnitude).
    assert jnp.allclose(loss, ref, atol=3e-2, rtol=1e-2), (loss, ref)

    print("KERNEL_OK")
</pallas_src>

<mosaic_0001>
module attributes {stable_mosaic.version = 11 : i64} {
  func.func @_contrastive_kernel(%arg0: i32, %arg1: i32, %arg2: i32, %arg3: memref<1x8x32xf32, #tpu.memory_space<vmem>>, %arg4: memref<1x8x32xf32, #tpu.memory_space<vmem>>, %arg5: memref<8x1xf32, #tpu.memory_space<vmem>>, %arg6: memref<1x8xf32, #tpu.memory_space<vmem>>, %arg7: memref<1x8x1xf32, #tpu.memory_space<vmem>>, %arg8: memref<8x32xf32, #tpu.memory_space<vmem>>, %arg9: memref<8x1xf32, #tpu.memory_space<vmem>>, %arg10: memref<8x1xf32, #tpu.memory_space<vmem>>) attributes {dimension_semantics = [#tpu.dimension_semantics<parallel>, #tpu.dimension_semantics<parallel>, #tpu.dimension_semantics<arbitrary>], iteration_bounds = array<i64: 2, 1, 1>, scalar_prefetch = 0 : i64, scratch_operands = 3 : i64, tpu.core_type = #tpu.core_type<tc>, window_params = [{transform_indices = @transform_0, window_bounds = array<i64: 1, 8, 32>}, {transform_indices = @transform_1, window_bounds = array<i64: 1, 8, 32>}, {transform_indices = @transform_2, window_bounds = array<i64: 8, 1>}, {transform_indices = @transform_3, window_bounds = array<i64: 1, 8>}, {transform_indices = @transform_4, window_bounds = array<i64: 1, 8, 1>}]} {
    %c0_i32 = arith.constant 0 : i32
    %0 = arith.cmpi eq, %arg2, %c0_i32 : i32
    %1 = arith.extui %0 : i1 to i32
    %c0_i32_0 = arith.constant 0 : i32
    %2 = arith.cmpi ne, %1, %c0_i32_0 : i32
    scf.if %2 {
      %c0_25 = arith.constant 0 : index
      %c0_26 = arith.constant 0 : index
      %c0_27 = arith.constant 0 : index
      %44 = vector.load %arg3[%c0_25, %c0_26, %c0_27] : memref<1x8x32xf32, #tpu.memory_space<vmem>>, vector<1x8x32xf32>
      %45 = vector.shape_cast %44 : vector<1x8x32xf32> to vector<8x32xf32>
      %46 = arith.mulf %45, %45 : vector<8x32xf32>
      %cst_28 = arith.constant dense<0.000000e+00> : vector<8xf32>
      %47 = vector.multi_reduction <add>, %46, %cst_28 [1] : vector<8x32xf32> to vector<8xf32>
      %48 = vector.shape_cast %47 : vector<8xf32> to vector<8x1xf32>
      %cst_29 = arith.constant 1.000000e-24 : f32
      %49 = vector.broadcast %cst_29 : f32 to vector<8x1xf32>
      %50 = arith.maximumf %48, %49 : vector<8x1xf32>
      %51 = math.rsqrt %50 : vector<8x1xf32>
      %52 = vector.broadcast %51 : vector<8x1xf32> to vector<8x32xf32>
      %53 = arith.mulf %45, %52 : vector<8x32xf32>
      %cst_30 = arith.constant 2.000000e+00 : f32
      %54 = vector.broadcast %cst_30 : f32 to vector<8x32xf32>
      %55 = arith.mulf %53, %54 : vector<8x32xf32>
      %c0_31 = arith.constant 0 : index
      %c0_32 = arith.constant 0 : index
      %56 = vector.load %arg8[%c0_31, %c0_32] : memref<8x32xf32, #tpu.memory_space<vmem>>, vector<8x32xf32>
      tpu.vector_store %arg8[%c0_31, %c0_32], %55 {strides = array<i32>} : memref<8x32xf32, #tpu.memory_space<vmem>>, vector<8x32xf32>,
      %cst_33 = arith.constant 0.000000e+00 : f32
      %57 = vector.broadcast %cst_33 : f32 to vector<8x1xf32>
      %c0_34 = arith.constant 0 : index
      %c0_35 = arith.constant 0 : index
      %58 = vector.load %arg9[%c0_34, %c0_35] : memref<8x1xf32, #tpu.memory_space<vmem>>, vector<8x1xf32>
      tpu.vector_store %arg9[%c0_34, %c0_35], %57 {strides = array<i32>} : memref<8x1xf32, #tpu.memory_space<vmem>>, vector<8x1xf32>,
      %cst_36 = arith.constant 0.000000e+00 : f32
      %59 = vector.broadcast %cst_36 : f32 to vector<8x1xf32>
      %c0_37 = arith.constant 0 : index
      %c0_38 = arith.constant 0 : index
      %60 = vector.load %arg10[%c0_37, %c0_38] : memref<8x1xf32, #tpu.memory_space<vmem>>, vector<8x1xf32>
      tpu.vector_store %arg10[%c0_37, %c0_38], %59 {strides = array<i32>} : memref<8x1xf32, #tpu.memory_space<vmem>>, vector<8x1xf32>,
    } else {
    }
    %c0 = arith.constant 0 : index
    %c0_1 = arith.constant 0 : index
    %c0_2 = arith.constant 0 : index
    %3 = vector.load %arg4[%c0, %c0_1, %c0_2] : memref<1x8x32xf32, #tpu.memory_space<vmem>>, vector<1x8x32xf32>
    %4 = vector.shape_cast %3 : vector<1x8x32xf32> to vector<8x32xf32>
    %5 = arith.mulf %4, %4 : vector<8x32xf32>
    %cst = arith.constant dense<0.000000e+00> : vector<8xf32>
    %6 = vector.multi_reduction <add>, %5, %cst [1] : vector<8x32xf32> to vector<8xf32>
    %7 = vector.shape_cast %6 : vector<8xf32> to vector<8x1xf32>
    %cst_3 = arith.constant 1.000000e-24 : f32
    %8 = vector.broadcast %cst_3 : f32 to vector<8x1xf32>
    %9 = arith.maximumf %7, %8 : vector<8x1xf32>
    %10 = math.rsqrt %9 : vector<8x1xf32>
    %11 = vector.broadcast %10 : vector<8x1xf32> to vector<8x32xf32>
    %12 = arith.mulf %4, %11 : vector<8x32xf32>
    %c0_4 = arith.constant 0 : index
    %c0_5 = arith.constant 0 : index
    %13 = vector.load %arg8[%c0_4, %c0_5] : memref<8x32xf32, #tpu.memory_space<vmem>>, vector<8x32xf32>
    %14 = arith.truncf %13 : vector<8x32xf32> to vector<8x32xbf16>
    %15 = arith.truncf %12 : vector<8x32xf32> to vector<8x32xbf16>
    %cst_6 = arith.constant dense<0.000000e+00> : vector<8x8xf32>
    %16 = tpu.matmul %14, %15, %cst_6 {dimension_numbers = #tpu.dot_dimension_numbers<[1], [1], [0], [0], [0, 0, 1, 0], [], []>} : vector<8x32xbf16>, vector<8x32xbf16>, vector<8x8xf32> -> vector<8x8xf32>
    %17 = math.exp %16 : vector<8x8xf32>
    %c0_7 = arith.constant 0 : index
    %c0_8 = arith.constant 0 : index
    %18 = vector.load %arg5[%c0_7, %c0_8] : memref<8x1xf32, #tpu.memory_space<vmem>>, vector<8x1xf32>
    %c0_9 = arith.constant 0 : index
    %c0_10 = arith.constant 0 : index
    %19 = vector.load %arg6[%c0_9, %c0_10] : memref<1x8xf32, #tpu.memory_space<vmem>>, vector<1x8xf32>
    %20 = vector.broadcast %19 : vector<1x8xf32> to vector<8x8xf32>
    %21 = arith.mulf %17, %20 : vector<8x8xf32>
    %cst_11 = arith.constant dense<0.000000e+00> : vector<8xf32>
    %22 = vector.multi_reduction <add>, %21, %cst_11 [1] : vector<8x8xf32> to vector<8xf32>
    %23 = vector.shape_cast %22 : vector<8xf32> to vector<8x1xf32>
    %cst_12 = arith.constant dense<0.000000e+00> : vector<8xf32>
    %24 = vector.multi_reduction <add>, %17, %cst_12 [1] : vector<8x8xf32> to vector<8xf32>
    %25 = vector.shape_cast %24 : vector<8xf32> to vector<8x1xf32>
    %26 = arith.mulf %18, %23 : vector<8x1xf32>
    %cst_13 = arith.constant 1.000000e+00 : f32
    %27 = vector.broadcast %cst_13 : f32 to vector<8x1xf32>
    %28 = arith.subf %27, %18 : vector<8x1xf32>
    %29 = arith.subf %25, %23 : vector<8x1xf32>
    %30 = arith.mulf %28, %29 : vector<8x1xf32>
    %31 = arith.addf %26, %30 : vector<8x1xf32>
    %c0_14 = arith.constant 0 : index
    %c0_15 = arith.constant 0 : index
    %32 = vector.load %arg9[%c0_14, %c0_15] : memref<8x1xf32, #tpu.memory_space<vmem>>, vector<8x1xf32>
    %33 = arith.addf %32, %31 : vector<8x1xf32>
    %c0_16 = arith.constant 0 : index
    %c0_17 = arith.constant 0 : index
    %34 = vector.load %arg9[%c0_16, %c0_17] : memref<8x1xf32, #tpu.memory_space<vmem>>, vector<8x1xf32>
    tpu.vector_store %arg9[%c0_16, %c0_17], %33 {strides = array<i32>} : memref<8x1xf32, #tpu.memory_space<vmem>>, vector<8x1xf32>,
    %c0_18 = arith.constant 0 : index
    %c0_19 = arith.constant 0 : index
    %35 = vector.load %arg10[%c0_18, %c0_19] : memref<8x1xf32, #tpu.memory_space<vmem>>, vector<8x1xf32>
    %36 = arith.addf %35, %25 : vector<8x1xf32>
    %c0_20 = arith.constant 0 : index
    %c0_21 = arith.constant 0 : index
    %37 = vector.load %arg10[%c0_20, %c0_21] : memref<8x1xf32, #tpu.memory_space<vmem>>, vector<8x1xf32>
    tpu.vector_store %arg10[%c0_20, %c0_21], %36 {strides = array<i32>} : memref<8x1xf32, #tpu.memory_space<vmem>>, vector<8x1xf32>,
    %38 = arith.cmpi eq, %arg2, %arg1 : i32
    %39 = arith.extui %38 : i1 to i32
    %c0_i32_22 = arith.constant 0 : i32
    %40 = arith.cmpi ne, %39, %c0_i32_22 : i32
    scf.if %40 {
      %44 = arith.extf %14 : vector<8x32xbf16> to vector<8x32xf32>
      %45 = arith.extf %15 : vector<8x32xbf16> to vector<8x32xf32>
      %46 = arith.mulf %44, %45 : vector<8x32xf32>
      %cst_25 = arith.constant dense<0.000000e+00> : vector<8xf32>
      %47 = vector.multi_reduction <add>, %46, %cst_25 [1] : vector<8x32xf32> to vector<8xf32>
      %48 = vector.shape_cast %47 : vector<8xf32> to vector<8x1xf32>
      %49 = math.exp %48 : vector<8x1xf32>
      %c0_26 = arith.constant 0 : index
      %c0_27 = arith.constant 0 : index
      %50 = vector.load %arg9[%c0_26, %c0_27] : memref<8x1xf32, #tpu.memory_space<vmem>>, vector<8x1xf32>
      %51 = arith.subf %50, %49 : vector<8x1xf32>
      %c0_28 = arith.constant 0 : index
      %c0_29 = arith.constant 0 : index
      %52 = vector.load %arg9[%c0_28, %c0_29] : memref<8x1xf32, #tpu.memory_space<vmem>>, vector<8x1xf32>
      tpu.vector_store %arg9[%c0_28, %c0_29], %51 {strides = array<i32>} : memref<8x1xf32, #tpu.memory_space<vmem>>, vector<8x1xf32>,
      %c0_30 = arith.constant 0 : index
      %c0_31 = arith.constant 0 : index
      %53 = vector.load %arg10[%c0_30, %c0_31] : memref<8x1xf32, #tpu.memory_space<vmem>>, vector<8x1xf32>
      %54 = arith.subf %53, %49 : vector<8x1xf32>
      %c0_32 = arith.constant 0 : index
      %c0_33 = arith.constant 0 : index
      %55 = vector.load %arg10[%c0_32, %c0_33] : memref<8x1xf32, #tpu.memory_space<vmem>>, vector<8x1xf32>
      tpu.vector_store %arg10[%c0_32, %c0_33], %54 {strides = array<i32>} : memref<8x1xf32, #tpu.memory_space<vmem>>, vector<8x1xf32>,
    } else {
    }
    %c0_i32_23 = arith.constant 0 : i32
    %41 = arith.cmpi eq, %arg2, %c0_i32_23 : i32
    %42 = arith.extui %41 : i1 to i32
    %c0_i32_24 = arith.constant 0 : i32
    %43 = arith.cmpi ne, %42, %c0_i32_24 : i32
    scf.if %43 {
      %c0_25 = arith.constant 0 : index
      %c0_26 = arith.constant 0 : index
      %44 = vector.load %arg9[%c0_25, %c0_26] : memref<8x1xf32, #tpu.memory_space<vmem>>, vector<8x1xf32>
      %c0_27 = arith.constant 0 : index
      %c0_28 = arith.constant 0 : index
      %45 = vector.load %arg10[%c0_27, %c0_28] : memref<8x1xf32, #tpu.memory_space<vmem>>, vector<8x1xf32>
      %46 = arith.divf %44, %45 : vector<8x1xf32>
      %cst_29 = arith.constant 9.99999993E-9 : f32
      %47 = vector.broadcast %cst_29 : f32 to vector<8x1xf32>
      %48 = arith.addf %46, %47 : vector<8x1xf32>
      %49 = math.log %48 : vector<8x1xf32>
      %cst_30 = arith.constant 0.000000e+00 : f32
      %50 = vector.broadcast %cst_30 : f32 to vector<8x1xf32>
      %51 = arith.subf %50, %49 : vector<8x1xf32>
      %c0_31 = arith.constant 0 : index
      %c0_32 = arith.constant 0 : index
      %c0_33 = arith.constant 0 : index
      %52 = vector.load %arg7[%c0_31, %c0_32, %c0_33] : memref<1x8x1xf32, #tpu.memory_space<vmem>>, vector<1x8x1xf32>
      %53 = vector.shape_cast %52 : vector<1x8x1xf32> to vector<8x1xf32>
      %54 = vector.shape_cast %51 : vector<8x1xf32> to vector<1x8x1xf32>
      tpu.vector_store %arg7[%c0_31, %c0_32, %c0_33], %54 {strides = array<i32>} : memref<1x8x1xf32, #tpu.memory_space<vmem>>, vector<1x8x1xf32>,
    } else {
    }
    return
  }
  func.func @transform_0(%arg0: i32, %arg1: i32, %arg2: i32) -> (i32, i32, i32) {
    %c0_i32 = arith.constant 0 : i32
    %c0_i32_0 = arith.constant 0 : i32
    return %arg0, %arg1, %c0_i32 : i32, i32, i32
  }
  func.func @transform_1(%arg0: i32, %arg1: i32, %arg2: i32) -> (i32, i32, i32) {
    %c0_i32 = arith.constant 0 : i32
    %c0_i32_0 = arith.constant 0 : i32
    return %arg0, %arg2, %c0_i32 : i32, i32, i32
  }
  func.func @transform_2(%arg0: i32, %arg1: i32, %arg2: i32) -> (i32, i32) {
    %c0_i32 = arith.constant 0 : i32
    %c0_i32_0 = arith.constant 0 : i32
    return %arg1, %c0_i32 : i32, i32
  }
  func.func @transform_3(%arg0: i32, %arg1: i32, %arg2: i32) -> (i32, i32) {
    %c0_i32 = arith.constant 0 : i32
    %c0_i32_0 = arith.constant 0 : i32
    return %c0_i32, %arg2 : i32, i32
  }
  func.func @transform_4(%arg0: i32, %arg1: i32, %arg2: i32) -> (i32, i32, i32) {
    %c0_i32 = arith.constant 0 : i32
    %c0_i32_0 = arith.constant 0 : i32
    return %arg0, %arg1, %c0_i32 : i32, i32, i32
  }
}

</mosaic_0001>

<llo_original>
// kernel: tpu_custom_call.1
$region0: #{tpu_custom_call.1}
  #allocation0 [shape = 'u32[]', space=smem, size = 0x4, offset = 0x4, fixed_abs, tag = 'smem constant byte address 0x4 - core index']
  #allocation1 [shape = 'u32[144,128]{1,0:T(1,128)}', space=vmem, size = 0x12000, scoped, tag = 'internal scratch']
  #allocation2 [shape = 'f32[8,32]{1,0:T(8,128)}', space=vmem, size = 0x1000, scoped, tag = 'scratch operand']
  #allocation3 [shape = 'f32[8,1]{1,0:T(8,128)}', space=vmem, size = 0x1000, scoped, tag = 'scratch operand']
  #allocation4 [shape = 'f32[8,1]{1,0:T(8,128)}', space=vmem, size = 0x1000, scoped, tag = 'scratch operand']
  %s0 = inlined_call_operand.hbm [shape: f32[2,8,32], index: 0, kind: input, shape index: {}]
  %s1 = inlined_call_operand.hbm [shape: f32[2,8,32], index: 1, kind: input, shape index: {}]
  %s2 = inlined_call_operand.vmem [shape: f32[8,1], index: 2, kind: input, shape index: {}]
  %s3 = inlined_call_operand.vmem [shape: f32[1,8], index: 3, kind: input, shape index: {}]
  %s4 = inlined_call_operand.vmem [shape: f32[2,8,1], index: 4, kind: output, shape index: {}]
  %s5 = sld [smem:[#allocation0]]
  $region69: #{tpu_custom_call.1} parent=0
    _
  %s7 = ssub.s32 1, %s5
  %s8 = scalar_select 0, %s7, %s5
  $region1: #{tpu_custom_call.1} parent=0
    #allocation5 [shape = 'u8[8192]{0}', space=vmem, size = 0x2000, scoped, tag = 'input window, operand 0']
    #allocation6 [shape = 's32[2]{0}', space=sflag, size = 0x8, scoped, tag = 'scoped memory for tpu_custom_call.1']
    #allocation7 [shape = 'u8[8192]{0}', space=vmem, size = 0x2000, scoped, tag = 'input window, operand 1']
    #allocation8 [shape = 's32[2]{0}', space=sflag, size = 0x8, scoped, tag = 'scoped memory for tpu_custom_call.1']
    %9 = vsyncpa [#allocation6], 0
    %s10 = scalar_lea.sflag [#allocation6], 1
    %11 = vsyncpa %s10, 0
    %12 = vsyncpa [#allocation8], 0
    %s13 = scalar_lea.sflag [#allocation8], 1
    %14 = vsyncpa %s13, 0
    loop: start=0, step=1, limit=4
    $region2: #{tpu_custom_call.1} parent=1 // loop_pre_header
      _
    $region3: #{tpu_custom_call.1} parent=1 // loop_header
      %s16 = sphi 0, %s20
      %p17 = scmp.ge.s32.totalorder %s16, 4
      %s23 = sphi 0, %s42
      %s24 = sphi 0, %s38
      %s25 = sphi 0, %s34
      %s26 = sphi 0, %s23
      %s27 = sphi 0, %s24
      %s28 = sphi 0, %s25
      %s29 = sphi 0, %s26
      %s30 = sphi 0, %s27
      %s31 = sphi 0, %s28
      %s47 = sphi 0, %s49
      %s50 = sphi 0, %s47
      %s51 = sphi 0, %s50
      %s67 = sphi 0, %s51
      %s75 = sphi 0, %s77
      %s78 = sphi 0, %s75
      %s79 = sphi 0, %s78
      %s95 = sphi 0, %s79
      %s101 = sphi 0, %s103
      %s104 = sphi 0, %s101
      %s105 = sphi 0, %s104
      %s121 = sphi 0, %s105
      %s127 = sphi 0, %s129
      %s130 = sphi 0, %s127
      %s131 = sphi 0, %s130
      %s147 = sphi 0, %s131
      %s155 = sphi 0, %s157
      %s158 = sphi 0, %s155
      %s159 = sphi 0, %s158
      %s175 = sphi 0, %s159
    $region4: #{tpu_custom_call.1} parent=1 // loop_header_branch
      %19 = sbr.rel (%p17) target = $region8
    $region5: #{tpu_custom_call.1} parent=1 // loop_body
      %s21 = ssub.s32 %s16, 1
      %s22 = ssub.s32 %s16, 2
      %s32 = sadd.s32 1, %s25
      %p33 = scmp.ge.s32.totalorder %s32, 1
      %s34 = scalar_select %p33, 0, %s32
      %s35 = sadd.s32 1, %s24
      %s36 = scalar_select %p33, %s35, %s24
      %p37 = scmp.ge.s32.totalorder %s36, 1
      %s38 = scalar_select %p37, 0, %s36
      %s39 = sadd.s32 1, %s23
      %s40 = scalar_select %p37, %s39, %s23
      %p41 = scmp.ge.s32.totalorder %s40, 2
      %s42 = scalar_select %p41, 0, %s40
      %s43 = ssub.s32 %s23, %s42
      %s44 = ssub.s32 %s24, %s38
      %s45 = sor.u32 %s43, %s44
      %p46 = scmp.eq.s32.totalorder %s45, 0
      %s48 = sadd.s32 %s47, 1
      %s49 = scalar_select %p46, %s47, %s48
      %p52 = pneg %p46
      %p53 = scmp.eq.s32.totalorder %s16, 1
      %p54 = por %p52, %p53
      %p55 = scmp.ne.s32.totalorder %s47, %s50
      %p56 = scmp.eq.s32.totalorder %s16, 0
      %p57 = por %p55, %p56
      %p58 = scmp.ne.s32.totalorder %s47, %s50
      %p59 = scmp.eq.s32.totalorder %s21, 1
      %p60 = por %p58, %p59
      %p61 = scmp.ne.s32.totalorder %s50, %s51
      %p62 = scmp.eq.s32.totalorder %s21, 0
      %p63 = por %p61, %p62
      %p64 = scmp.ne.s32.totalorder %s50, %s51
      %p65 = scmp.eq.s32.totalorder %s22, 1
      %p66 = por %p64, %p65
      %p68 = scmp.ne.s32.totalorder %s51, %s67
      %p69 = scmp.eq.s32.totalorder %s22, 0
      %p70 = por %p68, %p69
      %s71 = ssub.s32 %s23, %s42
      %s72 = ssub.s32 %s25, %s34
      %s73 = sor.u32 %s71, %s72
      %p74 = scmp.eq.s32.totalorder %s73, 0
      %s76 = sadd.s32 %s75, 1
      %s77 = scalar_select %p74, %s75, %s76
      %p80 = pneg %p74
      %p81 = scmp.eq.s32.totalorder %s16, 1
      %p82 = por %p80, %p81
      %p83 = scmp.ne.s32.totalorder %s75, %s78
      %p84 = scmp.eq.s32.totalorder %s16, 0
      %p85 = por %p83, %p84
      %p86 = scmp.ne.s32.totalorder %s75, %s78
      %p87 = scmp.eq.s32.totalorder %s21, 1
      %p88 = por %p86, %p87
      %p89 = scmp.ne.s32.totalorder %s78, %s79
      %p90 = scmp.eq.s32.totalorder %s21, 0
      %p91 = por %p89, %p90
      %p92 = scmp.ne.s32.totalorder %s78, %s79
      %p93 = scmp.eq.s32.totalorder %s22, 1
      %p94 = por %p92, %p93
      %p96 = scmp.ne.s32.totalorder %s79, %s95
      %p97 = scmp.eq.s32.totalorder %s22, 0
      %p98 = por %p96, %p97
      %s99 = ssub.s32 %s24, %s38
      %p100 = scmp.eq.s32.totalorder %s99, 0
      %s102 = sadd.s32 %s101, 1
      %s103 = scalar_select %p100, %s101, %s102
      %p106 = pneg %p100
      %p107 = scmp.eq.s32.totalorder %s16, 1
      %p108 = por %p106, %p107
      %p109 = scmp.ne.s32.totalorder %s101, %s104
      %p110 = scmp.eq.s32.totalorder %s16, 0
      %p111 = por %p109, %p110
      %p112 = scmp.ne.s32.totalorder %s101, %s104
      %p113 = scmp.eq.s32.totalorder %s21, 1
      %p114 = por %p112, %p113
      %p115 = scmp.ne.s32.totalorder %s104, %s105
      %p116 = scmp.eq.s32.totalorder %s21, 0
      %p117 = por %p115, %p116
      %p118 = scmp.ne.s32.totalorder %s104, %s105
      %p119 = scmp.eq.s32.totalorder %s22, 1
      %p120 = por %p118, %p119
      %p122 = scmp.ne.s32.totalorder %s105, %s121
      %p123 = scmp.eq.s32.totalorder %s22, 0
      %p124 = por %p122, %p123
      %s125 = ssub.s32 %s25, %s34
      %p126 = scmp.eq.s32.totalorder %s125, 0
      %s128 = sadd.s32 %s127, 1
      %s129 = scalar_select %p126, %s127, %s128
      %p132 = pneg %p126
      %p133 = scmp.eq.s32.totalorder %s16, 1
      %p134 = por %p132, %p133
      %p135 = scmp.ne.s32.totalorder %s127, %s130
      %p136 = scmp.eq.s32.totalorder %s16, 0
      %p137 = por %p135, %p136
      %p138 = scmp.ne.s32.totalorder %s127, %s130
      %p139 = scmp.eq.s32.totalorder %s21, 1
      %p140 = por %p138, %p139
      %p141 = scmp.ne.s32.totalorder %s130, %s131
      %p142 = scmp.eq.s32.totalorder %s21, 0
      %p143 = por %p141, %p142
      %p144 = scmp.ne.s32.totalorder %s130, %s131
      %p145 = scmp.eq.s32.totalorder %s22, 1
      %p146 = por %p144, %p145
      %p148 = scmp.ne.s32.totalorder %s131, %s147
      %p149 = scmp.eq.s32.totalorder %s22, 0
      %p150 = por %p148, %p149
      %s151 = ssub.s32 %s23, %s42
      %s152 = ssub.s32 %s24, %s38
      %s153 = sor.u32 %s151, %s152
      %p154 = scmp.eq.s32.totalorder %s153, 0
      %s156 = sadd.s32 %s155, 1
      %s157 = scalar_select %p154, %s155, %s156
      %p160 = pneg %p154
      %p161 = scmp.eq.s32.totalorder %s16, 1
      %p162 = por %p160, %p161
      %p163 = scmp.ne.s32.totalorder %s155, %s158
      %p164 = scmp.eq.s32.totalorder %s16, 0
      %p165 = por %p163, %p164
      %p166 = scmp.ne.s32.totalorder %s155, %s158
      %p167 = scmp.eq.s32.totalorder %s21, 1
      %p168 = por %p166, %p167
      %p169 = scmp.ne.s32.totalorder %s158, %s159
      %p170 = scmp.eq.s32.totalorder %s21, 0
      %p171 = por %p169, %p170
      %p172 = scmp.ne.s32.totalorder %s158, %s159
      %p173 = scmp.eq.s32.totalorder %s22, 1
      %p174 = por %p172, %p173
      %p176 = scmp.ne.s32.totalorder %s159, %s175
      %p177 = scmp.eq.s32.totalorder %s22, 0
      %p178 = por %p176, %p177
      %p179 = scmp.le.s32.totalorder 1, %s16
      %p180 = scmp.lt.s32.totalorder %s16, 3
      %p181 = pnand %p179, %p180
      %p182 = pneg %p181
      // Predicated region
      $region9: #{tpu_custom_call.1} parent=5 // pred_check
        _
      $region10: #{tpu_custom_call.1} parent=5 // pred_check_branch
        %184 = sbr.rel (%p181) target = $region12
      $region11: #{tpu_custom_call.1} parent=5 // pred_region
        %s185 = ssub.s32 %s16, 1
        // Predicated region
        $region13: #{tpu_custom_call.1} parent=11 // pred_check
          %p186 = pneg %p117
        $region14: #{tpu_custom_call.1} parent=11 // pred_check_branch
          %188 = sbr.rel (%p186) target = $region16
        $region15: #{tpu_custom_call.1} parent=11 // pred_region
          %p189 = scmp.lt.s32.totalorder %s27, 0
          %s190 = scalar_select %p189, %s27, 0
          %s191 = smul.addr %s190, 8
          %s192 = scalar_lea.vmem %s2, %s191
        $region16: #{tpu_custom_call.1} parent=11 // pred_fallthru
          _
        // Predicated region
        $region17: #{tpu_custom_call.1} parent=11 // pred_check
          %p193 = pneg %p143
        $region18: #{tpu_custom_call.1} parent=11 // pred_check_branch
          %195 = sbr.rel (%p193) target = $region20
        $region19: #{tpu_custom_call.1} parent=11 // pred_region
          %p196 = scmp.lt.s32.totalorder %s28, 0
          %s197 = scalar_select %p196, %s28, 0
          %s198 = scalar_lea.vmem %s3, %s197
        $region20: #{tpu_custom_call.1} parent=11 // pred_fallthru
          _
      $region12: #{tpu_custom_call.1} parent=5 // pred_fallthru
        _
      %p199 = scmp.lt.s32.totalorder %s16, 2
      // Predicated region
      $region21: #{tpu_custom_call.1} parent=5 // pred_check
        %p200 = pneg %p199
      $region22: #{tpu_custom_call.1} parent=5 // pred_check_branch
        %202 = sbr.rel (%p200) target = $region24
      $region23: #{tpu_custom_call.1} parent=5 // pred_region
        // Predicated region
        $region25: #{tpu_custom_call.1} parent=23 // pred_check
          %p203 = pneg %p57
        $region26: #{tpu_custom_call.1} parent=23 // pred_check_branch
          %205 = sbr.rel (%p203) target = $region28
        $region27: #{tpu_custom_call.1} parent=23 // pred_region
          %s206 = sand.u32 %s47, 1
          %s207 = scalar_lea.sflag [#allocation6], %s206
          %s208 = sand.u32 %s47, 1
          %s209 = smul.addr %s208, 8
          %s210 = scalar_lea.vmem [#allocation5], %s209
          %s212 = ssub.s32 128, 128
          %213 = vsyncadd %s207, %s212
          %s214 = sadd.s32 %s24, %s23
          %s215 = smul.addr %s214, 128
          %s216 = scalar_lea.hbm %s0, %s215
          %s218 = sshll.u32 %s210, 4
          %s219 = int_to_ptr.vmem [resolvable:$true] %s218
          %221 = dma.hbm_to_vmem [thread:$0]  %s216, 128, %s219, %s207
        $region28: #{tpu_custom_call.1} parent=23 // pred_fallthru
          _
        // Predicated region
        $region29: #{tpu_custom_call.1} parent=23 // pred_check
          %p222 = pneg %p85
        $region30: #{tpu_custom_call.1} parent=23 // pred_check_branch
          %224 = sbr.rel (%p222) target = $region32
        $region31: #{tpu_custom_call.1} parent=23 // pred_region
          %s225 = sand.u32 %s75, 1
          %s226 = scalar_lea.sflag [#allocation8], %s225
          %s227 = sand.u32 %s75, 1
          %s228 = smul.addr %s227, 8
          %s229 = scalar_lea.vmem [#allocation7], %s228
          %s231 = ssub.s32 128, 128
          %232 = vsyncadd %s226, %s231
          %s233 = sadd.s32 %s25, %s23
          %s234 = smul.addr %s233, 128
          %s235 = scalar_lea.hbm %s1, %s234
          %s237 = sshll.u32 %s229, 4
          %s238 = int_to_ptr.vmem [resolvable:$true] %s237
          %240 = dma.hbm_to_vmem [thread:$0]  %s235, 128, %s238, %s226
        $region32: #{tpu_custom_call.1} parent=23 // pred_fallthru
          _
      $region24: #{tpu_custom_call.1} parent=5 // pred_fallthru
        _
      %p241 = scmp.le.s32.totalorder 1, %s16
      %p242 = scmp.lt.s32.totalorder %s16, 3
      %p243 = pnand %p241, %p242
      %p244 = pneg %p243
      // Predicated region
      $region33: #{tpu_custom_call.1} parent=5 // pred_check
        _
      $region34: #{tpu_custom_call.1} parent=5 // pred_check_branch
        %246 = sbr.rel (%p243) target = $region36
      $region35: #{tpu_custom_call.1} parent=5 // pred_region
        %s247 = ssub.s32 %s16, 1
        %s248 = sand.u32 %s50, 1
        %s249 = scalar_lea.sflag [#allocation6], %s248
        %s250 = sand.u32 %s50, 1
        %s251 = smul.addr %s250, 8
        %s252 = scalar_lea.vmem [#allocation5], %s251
        // Predicated region
        $region37: #{tpu_custom_call.1} parent=35 // pred_check
          %p253 = pneg %p63
        $region38: #{tpu_custom_call.1} parent=35 // pred_check_branch
          %255 = sbr.rel (%p253) target = $region40
        $region39: #{tpu_custom_call.1} parent=35 // pred_region
          %256 = dma.done %s249, 128
        $region40: #{tpu_custom_call.1} parent=35 // pred_fallthru
          _
        %s257 = sand.u32 %s78, 1
        %s258 = scalar_lea.sflag [#allocation8], %s257
        %s259 = sand.u32 %s78, 1
        %s260 = smul.addr %s259, 8
        %s261 = scalar_lea.vmem [#allocation7], %s260
        // Predicated region
        $region41: #{tpu_custom_call.1} parent=35 // pred_check
          %p262 = pneg %p91
        $region42: #{tpu_custom_call.1} parent=35 // pred_check_branch
          %264 = sbr.rel (%p262) target = $region44
        $region43: #{tpu_custom_call.1} parent=35 // pred_region
          %265 = dma.done %s258, 128
        $region44: #{tpu_custom_call.1} parent=35 // pred_fallthru
          _
        %s266 = sand.u32 %s50, 1
        %s267 = scalar_lea.sflag [#allocation6], %s266
        %s268 = sand.u32 %s50, 1
        %s269 = smul.addr %s268, 8
        %s270 = scalar_lea.vmem [#allocation5], %s269
        %p271 = pneg %p63
        %p272 = pneg %p60
        %s273 = sand.u32 %s78, 1
        %s274 = scalar_lea.sflag [#allocation8], %s273
        %s275 = sand.u32 %s78, 1
        %s276 = smul.addr %s275, 8
        %s277 = scalar_lea.vmem [#allocation7], %s276
        %p278 = pneg %p91
        %p279 = pneg %p88
        %p280 = scmp.lt.s32.totalorder %s27, 0
        %s281 = scalar_select %p280, %s27, 0
        %s282 = smul.addr %s281, 8
        %s283 = scalar_lea.vmem %s2, %s282
        %p284 = pneg %p117
        %p285 = pneg %p114
        %p286 = scmp.lt.s32.totalorder %s28, 0
        %s287 = scalar_select %p286, %s28, 0
        %s288 = scalar_lea.vmem %s3, %s287
        %p289 = pneg %p143
        %p290 = pneg %p140
        %p291 = pneg %p171
        %p292 = pneg %p168
        %p293 = scmp.lt.s32.totalorder %s26, 1
        %s294 = scalar_select %p293, %s26, 1
        %p295 = scmp.lt.s32.totalorder %s27, 0
        %s296 = scalar_select %p295, %s27, 0
        %s297 = sadd.s32 %s296, %s294
        %s298 = smul.addr %s297, 8
        %s299 = scalar_lea.vmem %s4, %s298
        %p300 = scmp.lt.s32.totalorder %s27, 0
        %s301 = scalar_select %p300, %s27, 0
        %s302 = smul.addr %s301, 8
        %s303 = scalar_lea.vmem %s2, %s302
        %p304 = scmp.lt.s32.totalorder %s28, 0
        %s305 = scalar_select %p304, %s28, 0
        %s306 = scalar_lea.vmem %s3, %s305
        %p307 = scmp.lt.s32.totalorder %s26, 1
        %s308 = scalar_select %p307, %s26, 1
        %p309 = scmp.lt.s32.totalorder %s27, 0
        %s310 = scalar_select %p309, %s27, 0
        %s311 = sadd.s32 %s310, %s308
        %s312 = smul.addr %s311, 8
        %s313 = scalar_lea.vmem %s4, %s312
        %p315 = scmp.eq.s32.totalorder %s28, 0
        // Predicated region
        $region45: #{tpu_custom_call.1} parent=35 // pred_check
          %p316 = pneg %p315
        $region46: #{tpu_custom_call.1} parent=35 // pred_check_branch
          %318 = sbr.rel (%p316) target = $region48
        $region47: #{tpu_custom_call.1} parent=35 // pred_region
          %v319 = vld [vmem:[%s252] sm:$0xff]
          %v320 = vmul.f32 %v319, %v319
          %vm321 = vcmask 261120
          %v322 = vsel %vm321, %v320, 0.0
          %323 = vadd.xlane.f32.xlu0 %v322
          %v324 = vpop.xlane.xlu0 %323
          %v325 = vmax.f32 %v324, 1e-24
          %v326 = vrsqrt.pop %v325
          %v327 = vmul.f32 %v319, %v326
          %v328 = vmul.f32 %v327, 2.0
          %329 = vst.msk [vmem:[#allocation2] sm:$0xff] %vm321, %v328
          %vm330 = vcmask 7168
          %331 = vst.msk [vmem:[#allocation3] sm:$0xff] %vm330, 0.0
          %332 = vst.msk [vmem:[#allocation4] sm:$0xff] %vm330, 0.0
        $region48: #{tpu_custom_call.1} parent=35 // pred_fallthru
          _
        %v333 = vld [vmem:[%s261] sm:$0xff]
        %v334 = vmul.f32 %v333, %v333
        %vm335 = vcmask 261120
        %v336 = vsel %vm335, %v334, 0.0
        %337 = vadd.xlane.f32.xlu0 %v336
        %v338 = vpop.xlane.xlu0 %337
        %v339 = vmax.f32 %v338, 1e-24
        %v340 = vrsqrt.pop %v339
        %v341 = vmul.f32 %v333, %v340
        %v342 = vld [vmem:[#allocation2] sm:$0xff]
        %v343 = vpack.c.bf16 %v342, %v342
        %v344 = vpack.c.bf16 %v341, %v341
        %v346 = vsel %vm335, %v343, 0
        %v349 = vsel %vm335, %v344, 0
        %351 = vmatprep.subr.bf16.mxu0 0
        %352 = vmatpush1.bf16.xpose.msra.mxu0 0
        %353 = vmatprep.subr.bf16.mxu0 0
        %354 = vmatpush1.bf16.xpose.msra.mxu0 0
        %355 = vmatprep.subr.bf16.mxu0 0
        %356 = vmatpush1.bf16.xpose.msra.mxu0 0
        %357 = vmatprep.subr.bf16.mxu0 0
        %358 = vmatpush1.bf16.xpose.msra.mxu0 0
        %359 = vmatprep.subr.bf16.mxu0 0
        %360 = vmatpush1.bf16.xpose.msra.mxu0 0
        %361 = vmatprep.subr.bf16.mxu0 0
        %362 = vmatpush1.bf16.xpose.msra.mxu0 0
        %363 = vmatprep.subr.bf16.mxu0 0
        %364 = vmatpush1.bf16.xpose.msra.mxu0 0
        %365 = vmatprep.subr.bf16.mxu0 0
        %366 = vmatpush1.bf16.xpose.msra.mxu0 %v349
        %367 = vmatprep.subr.bf16.mxu0 0
        %368 = vmatpush2.bf16.xpose.msra.mxu0 0
        %369 = vmatprep.subr.bf16.mxu0 0
        %370 = vmatpush2.bf16.xpose.msra.mxu0 0
        %371 = vmatprep.subr.bf16.mxu0 0
        %372 = vmatpush2.bf16.xpose.msra.mxu0 0
        %373 = vmatprep.subr.bf16.mxu0 0
        %374 = vmatpush2.bf16.xpose.msra.mxu0 0
        %375 = vmatprep.subr.bf16.mxu0 0
        %376 = vmatpush2.bf16.xpose.msra.mxu0 0
        %377 = vmatprep.subr.bf16.mxu0 0
        %378 = vmatpush2.bf16.xpose.msra.mxu0 0
        %379 = vmatprep.subr.bf16.mxu0 0
        %380 = vmatpush2.bf16.xpose.msra.mxu0 0
        %381 = vmatprep.subr.bf16.mxu0 0
        %382 = vmatpush2.bf16.xpose.msra.mxu0 0
        %383 = vmatprep.mubr.bf16.mxu0 0
        %384 = vmatmul.mubr.bf16.gmra.mxu0 %v346
        %v385 = vpop.f32.mrf.mxu0
        %v386 = vadd.f32 0.0, %v385
        %v387 = vpop.f32.mrf.mxu0
        %v388 = vpop.f32.mrf.mxu0
        %v389 = vpop.f32.mrf.mxu0
        %390 = vdwg.mxu0
        %v391 = vmul.f32 %v386, 1.442695
        %v392 = vpow.pop %v391
        %v393 = vld [vmem:[%s303] sm:$0xff]
        %v394 = vld [vmem:[%s306] sm:$0x1]
        %v396 = vlaneseq
        %v397 = vshrl.u32 %v396, 7
        %v398 = vsub.s32 0, %v397
        %v399 = vrot.slane %v394, %v398
        %v401 = vmul.f32 %v392, %v399
        %vm402 = vcmask 64512
        %v403 = vsel %vm402, %v401, 0.0
        %404 = vadd.xlane.f32.xlu0 %v403
        %v405 = vpop.xlane.xlu0 %404
        %v406 = vsel %vm402, %v392, 0.0
        %407 = vadd.xlane.f32.xlu0 %v406
        %v408 = vpop.xlane.xlu0 %407
        %v409 = vmul.f32 %v393, %v405
        %v410 = vsub.f32 1.0, %v393
        %v411 = vsub.f32 %v408, %v405
        %v412 = vmul.f32 %v410, %v411
        %v413 = vadd.f32 %v409, %v412
        %v414 = vld [vmem:[#allocation3] sm:$0xff]
        %v415 = vadd.f32 %v414, %v413
        %vm416 = vcmask 7168
        %417 = vst.msk [vmem:[#allocation3] sm:$0xff] %vm416, %v415
        %v418 = vld [vmem:[#allocation4] sm:$0xff]
        %v419 = vadd.f32 %v418, %v408
        %420 = vst.msk [vmem:[#allocation4] sm:$0xff] %vm416, %v419
        %p421 = scmp.eq.s32.totalorder %s28, %s27
        // Predicated region
        $region49: #{tpu_custom_call.1} parent=35 // pred_check
          %p422 = pneg %p421
        $region50: #{tpu_custom_call.1} parent=35 // pred_check_branch
          %424 = sbr.rel (%p422) target = $region52
        $region51: #{tpu_custom_call.1} parent=35 // pred_region
          %v425 = vunpack.c.l.bf16 %v343
          %v426 = vunpack.c.l.bf16 %v344
          %v427 = vmul.f32 %v425, %v426
          %v428 = vsel %vm335, %v427, 0.0
          %429 = vadd.xlane.f32.xlu0 %v428
          %v430 = vpop.xlane.xlu0 %429
          %v431 = vmul.f32 %v430, 1.442695
          %v432 = vpow.pop %v431
          %v433 = vld [vmem:[#allocation3] sm:$0xff]
          %v434 = vsub.f32 %v433, %v432
          %435 = vst.msk [vmem:[#allocation3] sm:$0xff] %vm416, %v434
          %v436 = vld [vmem:[#allocation4] sm:$0xff]
          %v437 = vsub.f32 %v436, %v432
          %438 = vst.msk [vmem:[#allocation4] sm:$0xff] %vm416, %v437
        $region52: #{tpu_custom_call.1} parent=35 // pred_fallthru
          _
        // Predicated region
        $region53: #{tpu_custom_call.1} parent=35 // pred_check
          %p439 = pneg %p315
        $region54: #{tpu_custom_call.1} parent=35 // pred_check_branch
          %441 = sbr.rel (%p439) target = $region56
        $region55: #{tpu_custom_call.1} parent=35 // pred_region
          %v442 = vld [vmem:[#allocation3] sm:$0xff]
          %v443 = vld [vmem:[#allocation4] sm:$0xff]
          %v444 = vrcp.pop %v443
          %v445 = vmul.f32 %v442, %v444
          %v446 = vadd.f32 %v445, 1e-08
          %v447 = vlog2.pop %v446
          %v448 = vmul.f32 %v447, 0.6931472
          %v449 = vsub.f32 0.0, %v448
          %450 = vst.msk [vmem:[%s313] sm:$0xff] %vm416, %v449
        $region56: #{tpu_custom_call.1} parent=35 // pred_fallthru
          _
        %p451 = scmp.lt.s32.totalorder %s26, 1
        %s452 = scalar_select %p451, %s26, 1
        %p453 = scmp.lt.s32.totalorder %s27, 0
        %s454 = scalar_select %p453, %s27, 0
        %s455 = sadd.s32 %s454, %s452
        %s456 = smul.addr %s455, 8
        %s457 = scalar_lea.vmem %s4, %s456
        // Predicated region
        $region57: #{tpu_custom_call.1} parent=35 // pred_check
          %p458 = pneg %p168
        $region58: #{tpu_custom_call.1} parent=35 // pred_check_branch
          %460 = sbr.rel (%p458) target = $region60
        $region59: #{tpu_custom_call.1} parent=35 // pred_region
          _
        $region60: #{tpu_custom_call.1} parent=35 // pred_fallthru
          _
      $region36: #{tpu_custom_call.1} parent=5 // pred_fallthru
        _
      %p461 = scmp.le.s32.totalorder 2, %s16
      // Predicated region
      $region61: #{tpu_custom_call.1} parent=5 // pred_check
        %p462 = pneg %p461
      $region62: #{tpu_custom_call.1} parent=5 // pred_check_branch
        %464 = sbr.rel (%p462) target = $region64
      $region63: #{tpu_custom_call.1} parent=5 // pred_region
        %s465 = ssub.s32 %s16, 2
        // Predicated region
        $region65: #{tpu_custom_call.1} parent=63 // pred_check
          %p466 = pneg %p174
        $region66: #{tpu_custom_call.1} parent=63 // pred_check_branch
          %468 = sbr.rel (%p466) target = $region68
        $region67: #{tpu_custom_call.1} parent=63 // pred_region
          %p469 = scmp.lt.s32.totalorder %s29, 1
          %s470 = scalar_select %p469, %s29, 1
          %p471 = scmp.lt.s32.totalorder %s30, 0
          %s472 = scalar_select %p471, %s30, 0
          %s473 = sadd.s32 %s472, %s470
          %s474 = smul.addr %s473, 8
          %s475 = scalar_lea.vmem %s4, %s474
        $region68: #{tpu_custom_call.1} parent=63 // pred_fallthru
          _
      $region64: #{tpu_custom_call.1} parent=5 // pred_fallthru
        _
    $region6: #{tpu_custom_call.1} parent=1 // loop_footer
      %s20 = sadd.s32 1, %s16
    $region7: #{tpu_custom_call.1} parent=1 // loop_footer_branch
      %15 = sbr.rel target = $region3
    $region8: #{tpu_custom_call.1} parent=1 // loop_exit
      _
    %476 = vsyncpa [#allocation6], 1
    %s477 = scalar_lea.sflag [#allocation6], 1
    %478 = vsyncpa %s477, 1
    %479 = vsyncpa [#allocation8], 1
    %s480 = scalar_lea.sflag [#allocation8], 1
    %481 = vsyncpa %s480, 1

</llo_original>
